<compile_context>
chip_gen: v5e
topology: v5e:2x2
jax: 0.10.0
libtpu: 0.0.40
codegen_flags: <defaults>
</compile_context>

<pallas_src>
import jax
import jax.numpy as jnp
from jax import lax
from jax.experimental import pallas as pl
from jax.experimental.pallas import tpu as pltpu

NEG_FILL = -1000.0      # masked-score fill (matches the reference module)
LEAKY_SLOPE = 0.01      # nn.LeakyReLU default
BN_EPS = 1e-5           # nn.BatchNorm1d default
LANE = 128              # TPU lane width


def _leaky_relu(x):
    return jnp.maximum(x, LEAKY_SLOPE * x)


def attention_selection_kernel(
    x_ref, onehot_ref,
    w1_ref, b1_ref, w2_ref, b2_ref,          # feature extractor (bf16 W, f32 b)
    emb_ref,                                  # embedding table [2, H] bf16
    wc1_ref, bc1_ref, wc2_ref, bc2_ref,       # condition net
    wp1_ref, bp1_ref, gamma_ref, beta_ref,    # prediction linear 1 + BN affine
    wp2_ref, bp2_ref,                         # prediction linear 2 (lane-padded)
    out_ref,
):
    f32 = jnp.float32
    bf16 = jnp.bfloat16

    x3 = x_ref[...]                            # [B, N, D] f32
    B, N, D = x3.shape
    H = w1_ref.shape[1]

    # ---- get_mask: element valid iff any feature over trailing dims != 0.
    # Lane-dense [B, N] (N on lanes), computed on the f32 input (bf16 cast of x
    # happens only for the matmul so tiny values can't flush to 0 in the mask).
    mask2 = jnp.any(x3 != 0.0, axis=2)                           # [B, N] bool

    # ---- feature_extraction: Linear(D,H) -> ReLU -> Linear(H,H)
    # MXU sees 2-D bf16 matmuls with M = B*N; reshapes only merge/split leading
    # dims (minor/lane dim untouched) -> layout no-ops.
    x2 = x3.reshape(B * N, D).astype(bf16)
    h = jnp.dot(x2, w1_ref[...], preferred_element_type=f32) + b1_ref[...]
    h = jnp.maximum(h, 0.0)
    h = jnp.dot(h.astype(bf16), w2_ref[...],
                preferred_element_type=f32) + b2_ref[...]
    h3 = h.reshape(B, N, H)                                      # [B, N, H] f32

    # ---- embedding(condition) -> condition_net
    # condition_net is row-wise, so run it once on the 2-row table, then select
    # per-batch rows with a one-hot [B,2] @ [2,H] matmul (single MXU push,
    # independent of B; replaces the old per-batch scalar-blend loop).
    tbl = jnp.dot(emb_ref[...], wc1_ref[...],
                  preferred_element_type=f32) + bc1_ref[...]
    tbl = _leaky_relu(tbl)
    tbl = jnp.dot(tbl.astype(bf16), wc2_ref[...],
                  preferred_element_type=f32) + bc2_ref[...]
    tbl = _leaky_relu(tbl)                                       # [2, H] f32
    ctx = jnp.dot(onehot_ref[...], tbl.astype(bf16),
                  preferred_element_type=f32)                    # [B, H] f32
    ctx3 = ctx.reshape(B, 1, H)                                  # layout no-op

    # ---- score(h, context): dot over H as VPU multiply + XLU lane reduce,
    # producing a lane-dense [B, N] slab; masked fill with -1000.
    s2 = jnp.sum(h3 * ctx3, axis=-1)                             # [B, N] f32
    s2 = jnp.where(mask2, s2, NEG_FILL)

    # ---- softmax over the set dimension (lanes); reciprocal on the EUP slot.
    m = jnp.max(s2, axis=1, keepdims=True)                       # [B, 1]
    e = jnp.exp(s2 - m)
    w2d = e * pl.reciprocal(jnp.sum(e, axis=1, keepdims=True), approx=True)

    # ---- attention-weighted pooling on the MXU: [1,N] @ [N,H] per batch,
    # H-wide lane-dense output (replaces broadcast-mul + sublane reduce).
    w3 = w2d.reshape(B, 1, N)                                    # layout no-op
    final = jnp.einsum('bkn,bnh->bkh', w3.astype(bf16), h3.astype(bf16),
                       preferred_element_type=f32).reshape(B, H)

    # ---- prediction: Linear -> LeakyReLU -> BatchNorm1d(train) -> Linear
    p = _leaky_relu(jnp.dot(final.astype(bf16), wp1_ref[...],
                            preferred_element_type=f32) + bp1_ref[...])
    mu = jnp.mean(p, axis=0, keepdims=True)                      # batch stats
    var = jnp.mean(jnp.square(p - mu), axis=0, keepdims=True)    # biased (train)
    p = gamma_ref[...] * (p - mu) * lax.rsqrt(var + BN_EPS) + beta_ref[...]

    # wp2/bp2 are zero-padded to a multiple of 128 lanes (once, in
    # prepare_params), so this matmul and the out_ref write are unmasked
    # full-lane stores.
    out_ref[...] = (jnp.dot(p.astype(bf16), wp2_ref[...],
                            preferred_element_type=f32)
                    + bp2_ref[...])                              # [B, C_pad]


def prepare_params(params):
    """One-time conversion to kernel-ready layout.

    Hoisted out of the per-call wrapper: weight bf16 casts and the wp2/bp2
    lane-padding happen exactly once instead of on every forward.
    """
    f32, bf16 = jnp.float32, jnp.bfloat16
    H, C = params["wp2"].shape
    c_pad = ((C + LANE - 1) // LANE) * LANE
    wp2_p = jnp.zeros((H, c_pad), f32).at[:, :C].set(params["wp2"]).astype(bf16)
    bp2_p = jnp.zeros((1, c_pad), f32).at[:, :C].set(params["bp2"])
    return {
        "w1": params["w1"].astype(bf16), "b1": params["b1"],
        "w2": params["w2"].astype(bf16), "b2": params["b2"],
        "emb": params["emb"].astype(bf16),
        "wc1": params["wc1"].astype(bf16), "bc1": params["bc1"],
        "wc2": params["wc2"].astype(bf16), "bc2": params["bc2"],
        "wp1": params["wp1"].astype(bf16), "bp1": params["bp1"],
        "gamma": params["gamma"], "beta": params["beta"],
        "wp2_p": wp2_p, "bp2_p": bp2_p,
    }


def attention_selection(x, condition, prepped, num_classes):
    B, N, D = x.shape
    c_pad = prepped["wp2_p"].shape[1]

    # One-hot select for the 2-row embedding table (replaces SMEM scalar blend).
    # TODO(synk): nn.Embedding(2, H) would error on indices outside {0, 1};
    # here out-of-range indices just yield a zero context row.
    onehot = jax.nn.one_hot(condition.reshape(-1), 2, dtype=jnp.bfloat16)  # [B,2]

    args = (
        x.astype(jnp.float32), onehot,
        prepped["w1"], prepped["b1"], prepped["w2"], prepped["b2"],
        prepped["emb"],
        prepped["wc1"], prepped["bc1"], prepped["wc2"], prepped["bc2"],
        prepped["wp1"], prepped["bp1"], prepped["gamma"], prepped["beta"],
        prepped["wp2_p"], prepped["bp2_p"],
    )
    vmem = pl.BlockSpec(memory_space=pltpu.MemorySpace.VMEM)

    out_padded = pl.pallas_call(
        attention_selection_kernel,
        out_shape=jax.ShapeDtypeStruct((B, c_pad), jnp.float32),
        in_specs=[vmem] * len(args),
        out_specs=vmem,
        compiler_params=pltpu.CompilerParams(
            # well above the toy working set; also lifts v5e's 16 MiB scoped
            # default and stays under v7x's 64 MiB physical VMEM.
            vmem_limit_bytes=32 * 1024 * 1024,
        ),
    )(*args)
    return out_padded[:, :num_classes]


def init_params(key, input_size, hidden_size, num_classes):
    ks = jax.random.split(key, 10)
    n = lambda k, shape: jax.random.normal(k, shape, jnp.float32) * 0.1
    H, D, C = hidden_size, input_size, num_classes
    return {
        # FeatureExtractor: Linear(D,H) -> ReLU -> Linear(H,H)
        "w1": n(ks[0], (D, H)), "b1": n(ks[1], (1, H)),
        "w2": n(ks[2], (H, H)), "b2": n(ks[3], (1, H)),
        # Embedding(2, H)
        "emb": n(ks[4], (2, H)),
        # condition_net
        "wc1": n(ks[5], (H, H)), "bc1": jnp.zeros((1, H), jnp.float32),
        "wc2": n(ks[6], (H, H)), "bc2": jnp.zeros((1, H), jnp.float32),
        # prediction head
        "wp1": n(ks[7], (H, H)), "bp1": jnp.zeros((1, H), jnp.float32),
        "gamma": jnp.ones((1, H), jnp.float32), "beta": jnp.zeros((1, H), jnp.float32),
        "wp2": n(ks[8], (H, C)), "bp2": jnp.zeros((1, C), jnp.float32),
    }


if __name__ == "__main__":
    B, N, D, H, C = 2, 8, 16, 32, 4

    key = jax.random.PRNGKey(0)
    k_x, k_p = jax.random.split(key)

    x = jax.random.normal(k_x, (B, N, D), jnp.float32)
    # zero out a couple of set elements so the mask is non-trivial
    x = x.at[0, 3].set(0.0)
    x = x.at[1, 0].set(0.0)

    condition = jnp.array([[0], [1]], dtype=jnp.int32)   # [B, 1]

    params = init_params(k_p, D, H, C)
    prepped = prepare_params(params)                     # one-time prep

    out = attention_selection(x, condition, prepped, C)
    out = jax.block_until_ready(out)
    assert out.shape == (B, C) and out.dtype == jnp.float32
    assert bool(jnp.all(jnp.isfinite(out)))
    print("KERNEL_OK")
</pallas_src>

<mosaic_0001>
module attributes {stable_mosaic.version = 11 : i64} {
  func.func @attention_selection_kernel(%arg0: memref<2x8x16xf32, #tpu.memory_space<vmem>>, %arg1: memref<2x2xbf16, #tpu.memory_space<vmem>>, %arg2: memref<16x32xbf16, #tpu.memory_space<vmem>>, %arg3: memref<1x32xf32, #tpu.memory_space<vmem>>, %arg4: memref<32x32xbf16, #tpu.memory_space<vmem>>, %arg5: memref<1x32xf32, #tpu.memory_space<vmem>>, %arg6: memref<2x32xbf16, #tpu.memory_space<vmem>>, %arg7: memref<32x32xbf16, #tpu.memory_space<vmem>>, %arg8: memref<1x32xf32, #tpu.memory_space<vmem>>, %arg9: memref<32x32xbf16, #tpu.memory_space<vmem>>, %arg10: memref<1x32xf32, #tpu.memory_space<vmem>>, %arg11: memref<32x32xbf16, #tpu.memory_space<vmem>>, %arg12: memref<1x32xf32, #tpu.memory_space<vmem>>, %arg13: memref<1x32xf32, #tpu.memory_space<vmem>>, %arg14: memref<1x32xf32, #tpu.memory_space<vmem>>, %arg15: memref<32x128xbf16, #tpu.memory_space<vmem>>, %arg16: memref<1x128xf32, #tpu.memory_space<vmem>>, %arg17: memref<2x128xf32, #tpu.memory_space<vmem>>) attributes {dimension_semantics = [], scalar_prefetch = 0 : i64, scratch_operands = 0 : i64, tpu.core_type = #tpu.core_type<tc>} {
    %c0 = arith.constant 0 : index
    %c0_0 = arith.constant 0 : index
    %c0_1 = arith.constant 0 : index
    %0 = vector.load %arg0[%c0, %c0_0, %c0_1] : memref<2x8x16xf32, #tpu.memory_space<vmem>>, vector<2x8x16xf32>
    %cst = arith.constant 0.000000e+00 : f32
    %1 = vector.broadcast %cst : f32 to vector<2x8x16xf32>
    %2 = arith.cmpf one, %0, %1 : vector<2x8x16xf32>
    %cst_2 = arith.constant 1.000000e+00 : f32
    %cst_3 = arith.constant 0.000000e+00 : f32
    %3 = vector.broadcast %cst_2 : f32 to vector<2x8x16xf32>
    %4 = vector.broadcast %cst_3 : f32 to vector<2x8x16xf32>
    %5 = arith.select %2, %3, %4 : vector<2x8x16xi1>, vector<2x8x16xf32>
    %cst_4 = arith.constant dense<0xFF800000> : vector<2x8xf32>
    %6 = vector.multi_reduction <maximumf>, %5, %cst_4 [2] : vector<2x8x16xf32> to vector<2x8xf32>
    %cst_5 = arith.constant 0.000000e+00 : f32
    %7 = vector.broadcast %cst_5 : f32 to vector<2x8xf32>
    %8 = arith.cmpf ogt, %6, %7 : vector<2x8xf32>
    %9 = vector.shape_cast %0 : vector<2x8x16xf32> to vector<16x16xf32>
    %10 = arith.truncf %9 : vector<16x16xf32> to vector<16x16xbf16>
    %c0_6 = arith.constant 0 : index
    %c0_7 = arith.constant 0 : index
    %11 = vector.load %arg2[%c0_6, %c0_7] : memref<16x32xbf16, #tpu.memory_space<vmem>>, vector<16x32xbf16>
    %cst_8 = arith.constant dense<0.000000e+00> : vector<16x32xf32>
    %12 = tpu.matmul %10, %11, %cst_8 {dimension_numbers = #tpu.dot_dimension_numbers<[1], [0], [0], [1], [0, 0, 1, 1], [], []>} : vector<16x16xbf16>, vector<16x32xbf16>, vector<16x32xf32> -> vector<16x32xf32>
    %c0_9 = arith.constant 0 : index
    %c0_10 = arith.constant 0 : index
    %13 = vector.load %arg3[%c0_9, %c0_10] : memref<1x32xf32, #tpu.memory_space<vmem>>, vector<1x32xf32>
    %14 = vector.broadcast %13 : vector<1x32xf32> to vector<16x32xf32>
    %15 = arith.addf %12, %14 : vector<16x32xf32>
    %cst_11 = arith.constant 0.000000e+00 : f32
    %16 = vector.broadcast %cst_11 : f32 to vector<16x32xf32>
    %17 = arith.maximumf %15, %16 : vector<16x32xf32>
    %18 = arith.truncf %17 : vector<16x32xf32> to vector<16x32xbf16>
    %c0_12 = arith.constant 0 : index
    %c0_13 = arith.constant 0 : index
    %19 = vector.load %arg4[%c0_12, %c0_13] : memref<32x32xbf16, #tpu.memory_space<vmem>>, vector<32x32xbf16>
    %cst_14 = arith.constant dense<0.000000e+00> : vector<16x32xf32>
    %20 = tpu.matmul %18, %19, %cst_14 {dimension_numbers = #tpu.dot_dimension_numbers<[1], [0], [0], [1], [0, 0, 1, 1], [], []>} : vector<16x32xbf16>, vector<32x32xbf16>, vector<16x32xf32> -> vector<16x32xf32>
    %c0_15 = arith.constant 0 : index
    %c0_16 = arith.constant 0 : index
    %21 = vector.load %arg5[%c0_15, %c0_16] : memref<1x32xf32, #tpu.memory_space<vmem>>, vector<1x32xf32>
    %22 = vector.broadcast %21 : vector<1x32xf32> to vector<16x32xf32>
    %23 = arith.addf %20, %22 : vector<16x32xf32>
    %24 = vector.shape_cast %23 : vector<16x32xf32> to vector<2x8x32xf32>
    %c0_17 = arith.constant 0 : index
    %c0_18 = arith.constant 0 : index
    %25 = vector.load %arg6[%c0_17, %c0_18] : memref<2x32xbf16, #tpu.memory_space<vmem>>, vector<2x32xbf16>
    %c0_19 = arith.constant 0 : index
    %c0_20 = arith.constant 0 : index
    %26 = vector.load %arg7[%c0_19, %c0_20] : memref<32x32xbf16, #tpu.memory_space<vmem>>, vector<32x32xbf16>
    %cst_21 = arith.constant dense<0.000000e+00> : vector<2x32xf32>
    %27 = tpu.matmul %25, %26, %cst_21 {dimension_numbers = #tpu.dot_dimension_numbers<[1], [0], [0], [1], [0, 0, 1, 1], [], []>} : vector<2x32xbf16>, vector<32x32xbf16>, vector<2x32xf32> -> vector<2x32xf32>
    %c0_22 = arith.constant 0 : index
    %c0_23 = arith.constant 0 : index
    %28 = vector.load %arg8[%c0_22, %c0_23] : memref<1x32xf32, #tpu.memory_space<vmem>>, vector<1x32xf32>
    %29 = vector.broadcast %28 : vector<1x32xf32> to vector<2x32xf32>
    %30 = arith.addf %27, %29 : vector<2x32xf32>
    %cst_24 = arith.constant 0.00999999977 : f32
    %31 = vector.broadcast %cst_24 : f32 to vector<2x32xf32>
    %32 = arith.mulf %31, %30 : vector<2x32xf32>
    %33 = arith.maximumf %30, %32 : vector<2x32xf32>
    %34 = arith.truncf %33 : vector<2x32xf32> to vector<2x32xbf16>
    %c0_25 = arith.constant 0 : index
    %c0_26 = arith.constant 0 : index
    %35 = vector.load %arg9[%c0_25, %c0_26] : memref<32x32xbf16, #tpu.memory_space<vmem>>, vector<32x32xbf16>
    %cst_27 = arith.constant dense<0.000000e+00> : vector<2x32xf32>
    %36 = tpu.matmul %34, %35, %cst_27 {dimension_numbers = #tpu.dot_dimension_numbers<[1], [0], [0], [1], [0, 0, 1, 1], [], []>} : vector<2x32xbf16>, vector<32x32xbf16>, vector<2x32xf32> -> vector<2x32xf32>
    %c0_28 = arith.constant 0 : index
    %c0_29 = arith.constant 0 : index
    %37 = vector.load %arg10[%c0_28, %c0_29] : memref<1x32xf32, #tpu.memory_space<vmem>>, vector<1x32xf32>
    %38 = vector.broadcast %37 : vector<1x32xf32> to vector<2x32xf32>
    %39 = arith.addf %36, %38 : vector<2x32xf32>
    %cst_30 = arith.constant 0.00999999977 : f32
    %40 = vector.broadcast %cst_30 : f32 to vector<2x32xf32>
    %41 = arith.mulf %40, %39 : vector<2x32xf32>
    %42 = arith.maximumf %39, %41 : vector<2x32xf32>
    %c0_31 = arith.constant 0 : index
    %c0_32 = arith.constant 0 : index
    %43 = vector.load %arg1[%c0_31, %c0_32] : memref<2x2xbf16, #tpu.memory_space<vmem>>, vector<2x2xbf16>
    %44 = arith.truncf %42 : vector<2x32xf32> to vector<2x32xbf16>
    %cst_33 = arith.constant dense<0.000000e+00> : vector<2x32xf32>
    %45 = tpu.matmul %43, %44, %cst_33 {dimension_numbers = #tpu.dot_dimension_numbers<[1], [0], [0], [1], [0, 0, 1, 1], [], []>} : vector<2x2xbf16>, vector<2x32xbf16>, vector<2x32xf32> -> vector<2x32xf32>
    %46 = vector.shape_cast %45 : vector<2x32xf32> to vector<2x1x32xf32>
    %47 = vector.broadcast %46 : vector<2x1x32xf32> to vector<2x8x32xf32>
    %48 = arith.mulf %24, %47 : vector<2x8x32xf32>
    %cst_34 = arith.constant dense<0.000000e+00> : vector<2x8xf32>
    %49 = vector.multi_reduction <add>, %48, %cst_34 [2] : vector<2x8x32xf32> to vector<2x8xf32>
    %cst_35 = arith.constant -1.000000e+03 : f32
    %50 = vector.broadcast %cst_35 : f32 to vector<2x8xf32>
    %51 = arith.select %8, %49, %50 : vector<2x8xi1>, vector<2x8xf32>
    %cst_36 = arith.constant dense<0xFF800000> : vector<2xf32>
    %52 = vector.multi_reduction <maximumf>, %51, %cst_36 [1] : vector<2x8xf32> to vector<2xf32>
    %53 = vector.shape_cast %52 : vector<2xf32> to vector<2x1xf32>
    %54 = vector.broadcast %53 : vector<2x1xf32> to vector<2x8xf32>
    %55 = arith.subf %51, %54 : vector<2x8xf32>
    %56 = math.exp %55 : vector<2x8xf32>
    %cst_37 = arith.constant dense<0.000000e+00> : vector<2xf32>
    %57 = vector.multi_reduction <add>, %56, %cst_37 [1] : vector<2x8xf32> to vector<2xf32>
    %58 = vector.shape_cast %57 : vector<2xf32> to vector<2x1xf32>
    %59 = tpu.reciprocal %58 {approx = true} : vector<2x1xf32> -> vector<2x1xf32>
    %60 = vector.broadcast %59 : vector<2x1xf32> to vector<2x8xf32>
    %61 = arith.mulf %56, %60 : vector<2x8xf32>
    %62 = vector.shape_cast %61 : vector<2x8xf32> to vector<2x1x8xf32>
    %63 = arith.truncf %62 : vector<2x1x8xf32> to vector<2x1x8xbf16>
    %64 = arith.truncf %24 : vector<2x8x32xf32> to vector<2x8x32xbf16>
    "tpu.trace_start"() <{level = 10 : i32, message = "bkn,bnh->bkh"}> : () -> ()
    %cst_38 = arith.constant dense<0.000000e+00> : vector<2x1x32xf32>
    %65 = tpu.matmul %63, %64, %cst_38 {dimension_numbers = #tpu.dot_dimension_numbers<[2], [1], [1], [2], [0, 0, 0, 1, 1, 2], [0], [0]>} : vector<2x1x8xbf16>, vector<2x8x32xbf16>, vector<2x1x32xf32> -> vector<2x1x32xf32>
    "tpu.trace_stop"() : () -> ()
    %66 = vector.shape_cast %65 : vector<2x1x32xf32> to vector<2x32xf32>
    %67 = arith.truncf %66 : vector<2x32xf32> to vector<2x32xbf16>
    %c0_39 = arith.constant 0 : index
    %c0_40 = arith.constant 0 : index
    %68 = vector.load %arg11[%c0_39, %c0_40] : memref<32x32xbf16, #tpu.memory_space<vmem>>, vector<32x32xbf16>
    %cst_41 = arith.constant dense<0.000000e+00> : vector<2x32xf32>
    %69 = tpu.matmul %67, %68, %cst_41 {dimension_numbers = #tpu.dot_dimension_numbers<[1], [0], [0], [1], [0, 0, 1, 1], [], []>} : vector<2x32xbf16>, vector<32x32xbf16>, vector<2x32xf32> -> vector<2x32xf32>
    %c0_42 = arith.constant 0 : index
    %c0_43 = arith.constant 0 : index
    %70 = vector.load %arg12[%c0_42, %c0_43] : memref<1x32xf32, #tpu.memory_space<vmem>>, vector<1x32xf32>
    %71 = vector.broadcast %70 : vector<1x32xf32> to vector<2x32xf32>
    %72 = arith.addf %69, %71 : vector<2x32xf32>
    %cst_44 = arith.constant 0.00999999977 : f32
    %73 = vector.broadcast %cst_44 : f32 to vector<2x32xf32>
    %74 = arith.mulf %73, %72 : vector<2x32xf32>
    %75 = arith.maximumf %72, %74 : vector<2x32xf32>
    %cst_45 = arith.constant dense<0.000000e+00> : vector<32xf32>
    %76 = vector.multi_reduction <add>, %75, %cst_45 [0] : vector<2x32xf32> to vector<32xf32>
    %77 = vector.shape_cast %76 : vector<32xf32> to vector<1x32xf32>
    %cst_46 = arith.constant 2.000000e+00 : f32
    %78 = vector.broadcast %cst_46 : f32 to vector<1x32xf32>
    %79 = arith.divf %77, %78 : vector<1x32xf32>
    %80 = vector.broadcast %79 : vector<1x32xf32> to vector<2x32xf32>
    %81 = arith.subf %75, %80 : vector<2x32xf32>
    %82 = arith.mulf %81, %81 : vector<2x32xf32>
    %cst_47 = arith.constant dense<0.000000e+00> : vector<32xf32>
    %83 = vector.multi_reduction <add>, %82, %cst_47 [0] : vector<2x32xf32> to vector<32xf32>
    %84 = vector.shape_cast %83 : vector<32xf32> to vector<1x32xf32>
    %cst_48 = arith.constant 2.000000e+00 : f32
    %85 = vector.broadcast %cst_48 : f32 to vector<1x32xf32>
    %86 = arith.divf %84, %85 : vector<1x32xf32>
    %c0_49 = arith.constant 0 : index
    %c0_50 = arith.constant 0 : index
    %87 = vector.load %arg13[%c0_49, %c0_50] : memref<1x32xf32, #tpu.memory_space<vmem>>, vector<1x32xf32>
    %88 = vector.broadcast %79 : vector<1x32xf32> to vector<2x32xf32>
    %89 = arith.subf %75, %88 : vector<2x32xf32>
    %90 = vector.broadcast %87 : vector<1x32xf32> to vector<2x32xf32>
    %91 = arith.mulf %90, %89 : vector<2x32xf32>
    %cst_51 = arith.constant 9.99999974E-6 : f32
    %92 = vector.broadcast %cst_51 : f32 to vector<1x32xf32>
    %93 = arith.addf %86, %92 : vector<1x32xf32>
    %94 = math.rsqrt %93 : vector<1x32xf32>
    %95 = vector.broadcast %94 : vector<1x32xf32> to vector<2x32xf32>
    %96 = arith.mulf %91, %95 : vector<2x32xf32>
    %c0_52 = arith.constant 0 : index
    %c0_53 = arith.constant 0 : index
    %97 = vector.load %arg14[%c0_52, %c0_53] : memref<1x32xf32, #tpu.memory_space<vmem>>, vector<1x32xf32>
    %98 = vector.broadcast %97 : vector<1x32xf32> to vector<2x32xf32>
    %99 = arith.addf %96, %98 : vector<2x32xf32>
    %100 = arith.truncf %99 : vector<2x32xf32> to vector<2x32xbf16>
    %c0_54 = arith.constant 0 : index
    %c0_55 = arith.constant 0 : index
    %101 = vector.load %arg15[%c0_54, %c0_55] : memref<32x128xbf16, #tpu.memory_space<vmem>>, vector<32x128xbf16>
    %cst_56 = arith.constant dense<0.000000e+00> : vector<2x128xf32>
    %102 = tpu.matmul %100, %101, %cst_56 {dimension_numbers = #tpu.dot_dimension_numbers<[1], [0], [0], [1], [0, 0, 1, 1], [], []>} : vector<2x32xbf16>, vector<32x128xbf16>, vector<2x128xf32> -> vector<2x128xf32>
    %c0_57 = arith.constant 0 : index
    %c0_58 = arith.constant 0 : index
    %103 = vector.load %arg16[%c0_57, %c0_58] : memref<1x128xf32, #tpu.memory_space<vmem>>, vector<1x128xf32>
    %104 = vector.broadcast %103 : vector<1x128xf32> to vector<2x128xf32>
    %105 = arith.addf %102, %104 : vector<2x128xf32>
    %c0_59 = arith.constant 0 : index
    %c0_60 = arith.constant 0 : index
    %106 = vector.load %arg17[%c0_59, %c0_60] : memref<2x128xf32, #tpu.memory_space<vmem>>, vector<2x128xf32>
    tpu.vector_store %arg17[%c0_59, %c0_60], %105 {strides = array<i32>} : memref<2x128xf32, #tpu.memory_space<vmem>>, vector<2x128xf32>,
    return
  }
}

</mosaic_0001>

<llo_original>
// kernel: tpu_custom_call.1
$region0: #{tpu_custom_call.1}
  #allocation0 [shape = 'u32[]', space=smem, size = 0x4, offset = 0x4, fixed_abs, tag = 'smem constant byte address 0x4 - core index']
  #allocation1 [shape = 'u32[72,128]{1,0:T(1,128)}', space=vmem, size = 0x9000, scoped, tag = 'internal scratch']
  %s0 = inlined_call_operand.hbm [shape: f32[2,8,16], index: 0, kind: input, shape index: {}]
  %s1 = inlined_call_operand.hbm [shape: bf16[2,2], index: 1, kind: input, shape index: {}]
  %s2 = inlined_call_operand.hbm [shape: bf16[16,32], index: 2, kind: input, shape index: {}]
  %s3 = inlined_call_operand.vmem [shape: f32[1,32], index: 3, kind: input, shape index: {}]
  %s4 = inlined_call_operand.hbm [shape: bf16[32,32], index: 4, kind: input, shape index: {}]
  %s5 = inlined_call_operand.vmem [shape: f32[1,32], index: 5, kind: input, shape index: {}]
  %s6 = inlined_call_operand.vmem [shape: bf16[2,32], index: 6, kind: input, shape index: {}]
  %s7 = inlined_call_operand.hbm [shape: bf16[32,32], index: 7, kind: input, shape index: {}]
  %s8 = inlined_call_operand.vmem [shape: f32[1,32], index: 8, kind: input, shape index: {}]
  %s9 = inlined_call_operand.hbm [shape: bf16[32,32], index: 9, kind: input, shape index: {}]
  %s10 = inlined_call_operand.vmem [shape: f32[1,32], index: 10, kind: input, shape index: {}]
  %s11 = inlined_call_operand.hbm [shape: bf16[32,32], index: 11, kind: input, shape index: {}]
  %s12 = inlined_call_operand.vmem [shape: f32[1,32], index: 12, kind: input, shape index: {}]
  %s13 = inlined_call_operand.vmem [shape: f32[1,32], index: 13, kind: input, shape index: {}]
  %s14 = inlined_call_operand.vmem [shape: f32[1,32], index: 14, kind: input, shape index: {}]
  %s15 = inlined_call_operand.hbm [shape: bf16[32,128], index: 15, kind: input, shape index: {}]
  %s16 = inlined_call_operand.vmem [shape: f32[1,128], index: 16, kind: input, shape index: {}]
  %s17 = inlined_call_operand.hbm [shape: f32[2,128], index: 17, kind: output, shape index: {}]
  %s18 = sld [smem:[#allocation0]]
  $region110: #{tpu_custom_call.1} parent=0
    _
  %s20 = ssub.s32 1, %s18
  %s21 = scalar_select 0, %s20, %s18
  $region1: #{tpu_custom_call.1} parent=0
    #allocation2 [shape = 'u8[8192]{0}', space=vmem, size = 0x2000, scoped, tag = 'input window, operand 0, single buffered']
    #allocation3 [shape = 's32[1]{0}', space=sflag, size = 0x4, scoped, tag = 'scoped memory for tpu_custom_call.1']
    #allocation4 [shape = 's32[1]{0}', space=sflag, size = 0x4, scoped, tag = 'scoped memory for tpu_custom_call.1']
    #allocation5 [shape = 'u8[512]{0}', space=vmem, size = 0x400, scoped, tag = 'input window, operand 1, single buffered']
    #allocation6 [shape = 's32[1]{0}', space=sflag, size = 0x4, scoped, tag = 'scoped memory for tpu_custom_call.1']
    #allocation7 [shape = 'u8[4096]{0}', space=vmem, size = 0x1000, scoped, tag = 'input window, operand 2, single buffered']
    #allocation8 [shape = 'u8[8192]{0}', space=vmem, size = 0x2000, scoped, tag = 'input window, operand 4, single buffered']
    #allocation9 [shape = 's32[1]{0}', space=sflag, size = 0x4, scoped, tag = 'scoped memory for tpu_custom_call.1']
    #allocation10 [shape = 'u8[8192]{0}', space=vmem, size = 0x2000, scoped, tag = 'input window, operand 7, single buffered']
    #allocation11 [shape = 'u8[8192]{0}', space=vmem, size = 0x2000, scoped, tag = 'input window, operand 9, single buffered']
    #allocation12 [shape = 's32[1]{0}', space=sflag, size = 0x4, scoped, tag = 'scoped memory for tpu_custom_call.1']
    #allocation13 [shape = 'u8[8192]{0}', space=vmem, size = 0x2000, scoped, tag = 'input window, operand 11, single buffered']
    #allocation14 [shape = 'u8[8192]{0}', space=vmem, size = 0x2000, scoped, tag = 'input window, operand 15, single buffered']
    #allocation15 [shape = 's32[1]{0}', space=sflag, size = 0x4, scoped, tag = 'scoped memory for tpu_custom_call.1']
    #allocation16 [shape = 'u8[1024]{0}', space=vmem, size = 0x400, scoped, tag = 'output window, operand 0, single buffered']
    %22 = vsyncpa [#allocation3], 0
    %23 = vsyncpa [#allocation6], 0
    %24 = vsyncpa [#allocation9], 0
    %25 = vsyncpa [#allocation12], 0
    %26 = vsyncpa [#allocation15], 0
    %27 = vsyncpa [#allocation4], 0
    // Predicated region
    $region2: #{tpu_custom_call.1} parent=1 // pred_check
      _
    $region3: #{tpu_custom_call.1} parent=1 // pred_check_branch
      %29 = sbr.rel (0) target = $region5
    $region4: #{tpu_custom_call.1} parent=1 // pred_region
      %31 = vsyncadd [#allocation3], 0
      %s32 = sshll.u32 %s0, 4
      %s33 = int_to_ptr.hbm [resolvable:$true] %s32
      %s34 = sshll.u32 [#allocation2], 4
      %s35 = int_to_ptr.vmem [resolvable:$true] %s34
      %40 = dma.hbm_to_vmem [thread:$0]  %s33, 256, %s35, [#allocation3], 128, 128, 8
    $region5: #{tpu_custom_call.1} parent=1 // pred_fallthru
      _
    // Predicated region
    $region6: #{tpu_custom_call.1} parent=1 // pred_check
      _
    $region7: #{tpu_custom_call.1} parent=1 // pred_check_branch
      %42 = sbr.rel (0) target = $region9
    $region8: #{tpu_custom_call.1} parent=1 // pred_region
      %44 = vsyncadd [#allocation6], 0
      %s46 = sshll.u32 %s1, 4
      %s47 = int_to_ptr.hbm [resolvable:$true] %s46
      %s48 = sshll.u32 [#allocation5], 4
      %s49 = int_to_ptr.vmem [resolvable:$true] %s48
      %51 = dma.hbm_to_vmem [thread:$0]  %s47, 16, %s49, [#allocation6]
    $region9: #{tpu_custom_call.1} parent=1 // pred_fallthru
      _
    // Predicated region
    $region10: #{tpu_custom_call.1} parent=1 // pred_check
      _
    $region11: #{tpu_custom_call.1} parent=1 // pred_check_branch
      %53 = sbr.rel (0) target = $region13
    $region12: #{tpu_custom_call.1} parent=1 // pred_region
      %55 = vsyncadd [#allocation6], 0
      %s56 = sshll.u32 %s2, 4
      %s57 = int_to_ptr.hbm [resolvable:$true] %s56
      %s58 = sshll.u32 [#allocation7], 4
      %s59 = int_to_ptr.vmem [resolvable:$true] %s58
      %64 = dma.hbm_to_vmem [thread:$0]  %s57, 128, %s59, [#allocation6], 64, 64, 4
    $region13: #{tpu_custom_call.1} parent=1 // pred_fallthru
      _
    // Predicated region
    $region14: #{tpu_custom_call.1} parent=1 // pred_check
      _
    $region15: #{tpu_custom_call.1} parent=1 // pred_check_branch
      %66 = sbr.rel (0) target = $region17
    $region16: #{tpu_custom_call.1} parent=1 // pred_region
      _
    $region17: #{tpu_custom_call.1} parent=1 // pred_fallthru
      _
    // Predicated region
    $region18: #{tpu_custom_call.1} parent=1 // pred_check
      _
    $region19: #{tpu_custom_call.1} parent=1 // pred_check_branch
      %68 = sbr.rel (0) target = $region21
    $region20: #{tpu_custom_call.1} parent=1 // pred_region
      %70 = vsyncadd [#allocation9], 0
      %s71 = sshll.u32 %s4, 4
      %s72 = int_to_ptr.hbm [resolvable:$true] %s71
      %s73 = sshll.u32 [#allocation8], 4
      %s74 = int_to_ptr.vmem [resolvable:$true] %s73
      %79 = dma.hbm_to_vmem [thread:$0]  %s72, 256, %s74, [#allocation9], 64, 64, 4
    $region21: #{tpu_custom_call.1} parent=1 // pred_fallthru
      _
    // Predicated region
    $region22: #{tpu_custom_call.1} parent=1 // pred_check
      _
    $region23: #{tpu_custom_call.1} parent=1 // pred_check_branch
      %81 = sbr.rel (0) target = $region25
    $region24: #{tpu_custom_call.1} parent=1 // pred_region
      _
    $region25: #{tpu_custom_call.1} parent=1 // pred_fallthru
      _
    // Predicated region
    $region26: #{tpu_custom_call.1} parent=1 // pred_check
      _
    $region27: #{tpu_custom_call.1} parent=1 // pred_check_branch
      %83 = sbr.rel (0) target = $region29
    $region28: #{tpu_custom_call.1} parent=1 // pred_region
      _
    $region29: #{tpu_custom_call.1} parent=1 // pred_fallthru
      _
    // Predicated region
    $region30: #{tpu_custom_call.1} parent=1 // pred_check
      _
    $region31: #{tpu_custom_call.1} parent=1 // pred_check_branch
      %85 = sbr.rel (0) target = $region33
    $region32: #{tpu_custom_call.1} parent=1 // pred_region
      %87 = vsyncadd [#allocation9], 0
      %s88 = sshll.u32 %s7, 4
      %s89 = int_to_ptr.hbm [resolvable:$true] %s88
      %s90 = sshll.u32 [#allocation10], 4
      %s91 = int_to_ptr.vmem [resolvable:$true] %s90
      %96 = dma.hbm_to_vmem [thread:$0]  %s89, 256, %s91, [#allocation9], 64, 64, 4
    $region33: #{tpu_custom_call.1} parent=1 // pred_fallthru
      _
    // Predicated region
    $region34: #{tpu_custom_call.1} parent=1 // pred_check
      _
    $region35: #{tpu_custom_call.1} parent=1 // pred_check_branch
      %98 = sbr.rel (0) target = $region37
    $region36: #{tpu_custom_call.1} parent=1 // pred_region
      _
    $region37: #{tpu_custom_call.1} parent=1 // pred_fallthru
      _
    // Predicated region
    $region38: #{tpu_custom_call.1} parent=1 // pred_check
      _
    $region39: #{tpu_custom_call.1} parent=1 // pred_check_branch
      %100 = sbr.rel (0) target = $region41
    $region40: #{tpu_custom_call.1} parent=1 // pred_region
      %102 = vsyncadd [#allocation12], 0
      %s103 = sshll.u32 %s9, 4
      %s104 = int_to_ptr.hbm [resolvable:$true] %s103
      %s105 = sshll.u32 [#allocation11], 4
      %s106 = int_to_ptr.vmem [resolvable:$true] %s105
      %111 = dma.hbm_to_vmem [thread:$0]  %s104, 256, %s106, [#allocation12], 64, 64, 4
    $region41: #{tpu_custom_call.1} parent=1 // pred_fallthru
      _
    // Predicated region
    $region42: #{tpu_custom_call.1} parent=1 // pred_check
      _
    $region43: #{tpu_custom_call.1} parent=1 // pred_check_branch
      %113 = sbr.rel (0) target = $region45
    $region44: #{tpu_custom_call.1} parent=1 // pred_region
      _
    $region45: #{tpu_custom_call.1} parent=1 // pred_fallthru
      _
    // Predicated region
    $region46: #{tpu_custom_call.1} parent=1 // pred_check
      _
    $region47: #{tpu_custom_call.1} parent=1 // pred_check_branch
      %115 = sbr.rel (0) target = $region49
    $region48: #{tpu_custom_call.1} parent=1 // pred_region
      %117 = vsyncadd [#allocation12], 0
      %s118 = sshll.u32 %s11, 4
      %s119 = int_to_ptr.hbm [resolvable:$true] %s118
      %s120 = sshll.u32 [#allocation13], 4
      %s121 = int_to_ptr.vmem [resolvable:$true] %s120
      %126 = dma.hbm_to_vmem [thread:$0]  %s119, 256, %s121, [#allocation12], 64, 64, 4
    $region49: #{tpu_custom_call.1} parent=1 // pred_fallthru
      _
    // Predicated region
    $region50: #{tpu_custom_call.1} parent=1 // pred_check
      _
    $region51: #{tpu_custom_call.1} parent=1 // pred_check_branch
      %128 = sbr.rel (0) target = $region53
    $region52: #{tpu_custom_call.1} parent=1 // pred_region
      _
    $region53: #{tpu_custom_call.1} parent=1 // pred_fallthru
      _
    // Predicated region
    $region54: #{tpu_custom_call.1} parent=1 // pred_check
      _
    $region55: #{tpu_custom_call.1} parent=1 // pred_check_branch
      %130 = sbr.rel (0) target = $region57
    $region56: #{tpu_custom_call.1} parent=1 // pred_region
      _
    $region57: #{tpu_custom_call.1} parent=1 // pred_fallthru
      _
    // Predicated region
    $region58: #{tpu_custom_call.1} parent=1 // pred_check
      _
    $region59: #{tpu_custom_call.1} parent=1 // pred_check_branch
      %132 = sbr.rel (0) target = $region61
    $region60: #{tpu_custom_call.1} parent=1 // pred_region
      _
    $region61: #{tpu_custom_call.1} parent=1 // pred_fallthru
      _
    // Predicated region
    $region62: #{tpu_custom_call.1} parent=1 // pred_check
      _
    $region63: #{tpu_custom_call.1} parent=1 // pred_check_branch
      %134 = sbr.rel (0) target = $region65
    $region64: #{tpu_custom_call.1} parent=1 // pred_region
      %136 = vsyncadd [#allocation15], 0
      %s137 = sshll.u32 %s15, 4
      %s138 = int_to_ptr.hbm [resolvable:$true] %s137
      %s139 = sshll.u32 [#allocation14], 4
      %s140 = int_to_ptr.vmem [resolvable:$true] %s139
      %145 = dma.hbm_to_vmem [thread:$0]  %s138, 256, %s140, [#allocation15], 64, 64, 4
    $region65: #{tpu_custom_call.1} parent=1 // pred_fallthru
      _
    // Predicated region
    $region66: #{tpu_custom_call.1} parent=1 // pred_check
      _
    $region67: #{tpu_custom_call.1} parent=1 // pred_check_branch
      %147 = sbr.rel (0) target = $region69
    $region68: #{tpu_custom_call.1} parent=1 // pred_region
      _
    $region69: #{tpu_custom_call.1} parent=1 // pred_fallthru
      _
    // Predicated region
    $region70: #{tpu_custom_call.1} parent=1 // pred_check
      _
    $region71: #{tpu_custom_call.1} parent=1 // pred_check_branch
      %149 = sbr.rel (0) target = $region73
    $region72: #{tpu_custom_call.1} parent=1 // pred_region
      %151 = dma.done [#allocation3], 256
    $region73: #{tpu_custom_call.1} parent=1 // pred_fallthru
      _
    // Predicated region
    $region74: #{tpu_custom_call.1} parent=1 // pred_check
      _
    $region75: #{tpu_custom_call.1} parent=1 // pred_check_branch
      %153 = sbr.rel (0) target = $region77
    $region76: #{tpu_custom_call.1} parent=1 // pred_region
      %155 = dma.done [#allocation6], 16
    $region77: #{tpu_custom_call.1} parent=1 // pred_fallthru
      _
    // Predicated region
    $region78: #{tpu_custom_call.1} parent=1 // pred_check
      _
    $region79: #{tpu_custom_call.1} parent=1 // pred_check_branch
      %157 = sbr.rel (0) target = $region81
    $region80: #{tpu_custom_call.1} parent=1 // pred_region
      %159 = dma.done [#allocation6], 128
    $region81: #{tpu_custom_call.1} parent=1 // pred_fallthru
      _
    // Predicated region
    $region82: #{tpu_custom_call.1} parent=1 // pred_check
      _
    $region83: #{tpu_custom_call.1} parent=1 // pred_check_branch
      %161 = sbr.rel (0) target = $region85
    $region84: #{tpu_custom_call.1} parent=1 // pred_region
      %163 = dma.done [#allocation9], 256
    $region85: #{tpu_custom_call.1} parent=1 // pred_fallthru
      _
    // Predicated region
    $region86: #{tpu_custom_call.1} parent=1 // pred_check
      _
    $region87: #{tpu_custom_call.1} parent=1 // pred_check_branch
      %165 = sbr.rel (0) target = $region89
    $region88: #{tpu_custom_call.1} parent=1 // pred_region
      %167 = dma.done [#allocation9], 256
    $region89: #{tpu_custom_call.1} parent=1 // pred_fallthru
      _
    // Predicated region
    $region90: #{tpu_custom_call.1} parent=1 // pred_check
      _
    $region91: #{tpu_custom_call.1} parent=1 // pred_check_branch
      %169 = sbr.rel (0) target = $region93
    $region92: #{tpu_custom_call.1} parent=1 // pred_region
      %171 = dma.done [#allocation12], 256
    $region93: #{tpu_custom_call.1} parent=1 // pred_fallthru
      _
    // Predicated region
    $region94: #{tpu_custom_call.1} parent=1 // pred_check
      _
    $region95: #{tpu_custom_call.1} parent=1 // pred_check_branch
      %173 = sbr.rel (0) target = $region97
    $region96: #{tpu_custom_call.1} parent=1 // pred_region
      %175 = dma.done [#allocation12], 256
    $region97: #{tpu_custom_call.1} parent=1 // pred_fallthru
      _
    // Predicated region
    $region98: #{tpu_custom_call.1} parent=1 // pred_check
      _
    $region99: #{tpu_custom_call.1} parent=1 // pred_check_branch
      %177 = sbr.rel (0) target = $region101
    $region100: #{tpu_custom_call.1} parent=1 // pred_region
      %179 = dma.done [#allocation15], 256
    $region101: #{tpu_custom_call.1} parent=1 // pred_fallthru
      _
    %v181 = vld [vmem:[#allocation2] sm:$0xff]
    %v182 = vld [vmem:[#allocation2 + $0x8] sm:$0xff]
    %vm183 = vcmp.ne.f32.partialorder %v181, 0.0
    %vm184 = vcmp.ne.f32.partialorder %v182, 0.0
    %v185 = vsel %vm183, 1.0, 0.0
    %v186 = vsel %vm184, 1.0, 0.0
    %vm187 = vcmask 130048
    %v188 = vsel %vm187, %v185, -inf
    %189 = vmax.xlane.f32.xlu0 %v188
    %v190 = vpop.xlane.xlu0 %189
    %v191 = vsel %vm187, %v186, -inf
    %192 = vmax.xlane.f32.xlu0 %v191
    %v193 = vpop.xlane.xlu0 %192
    %vm194 = vcmp.gt.f32.partialorder %v190, 0.0
    %vm195 = vcmp.gt.f32.partialorder %v193, 0.0
    %v196 = vpack.c.bf16 %v182, %v181
    %v197 = vld [vmem:[#allocation7] sm:$0xf]
    %v198 = vld [vmem:[#allocation7 + $0x4] sm:$0xf]
    %v199 = vld [vmem:[%s3] sm:$0x1]
    %v201 = vperm.slane %v199, 0
    %v205 = vunpack.c.l.b16 %v197
    %v206 = vunpack.c.l.b16 %v198
    %v207 = vpack.c.b16 %v206, %v205
    %v210 = vsel %vm187, %v196, 0
    %212 = vmatpush.bf16.msra.mxu0 0
    %213 = vmatpush.bf16.msra.mxu0 0
    %214 = vmatpush.bf16.msra.mxu0 0
    %215 = vmatpush.bf16.msra.mxu0 0
    %216 = vmatpush.bf16.msra.mxu0 0
    %217 = vmatpush.bf16.msra.mxu0 0
    %218 = vmatpush.bf16.msra.mxu0 0
    %219 = vmatpush.bf16.msra.mxu0 %v207
    %220 = vmatmul.bf16.gmra.mxu0 %v210
    %v221 = vpop.f32.mrf.mxu0
    %v222 = vadd.f32 %v201, %v221
    %v223 = vpop.f32.mrf.mxu0
    %v224 = vadd.f32 %v201, %v223
    %225 = vdwg.mxu0
    %v226 = vmax.f32 %v222, 0.0
    %v227 = vmax.f32 %v224, 0.0
    %v228 = vpack.c.bf16 %v227, %v226
    %v229 = vld [vmem:[#allocation8] sm:$0xf]
    %v230 = vld [vmem:[#allocation8 + $0x4] sm:$0xf]
    %v231 = vld [vmem:[#allocation8 + $0x8] sm:$0xf]
    %v232 = vld [vmem:[#allocation8 + $0xc] sm:$0xf]
    %v233 = vld [vmem:[%s5] sm:$0x1]
    %v235 = vperm.slane %v233, 0
    %v241 = vunpack.c.l.b16 %v229
    %v242 = vunpack.c.l.b16 %v230
    %v243 = vunpack.c.l.b16 %v231
    %v244 = vunpack.c.l.b16 %v232
    %v245 = vpack.c.b16 %v242, %v241
    %v246 = vpack.c.b16 %v244, %v243
    %vm249 = vcmask 261120
    %v251 = vsel %vm249, %v228, 0
    %253 = vmatpush.bf16.msra.mxu0 0
    %254 = vmatpush.bf16.msra.mxu0 0
    %255 = vmatpush.bf16.msra.mxu0 0
    %256 = vmatpush.bf16.msra.mxu0 0
    %257 = vmatpush.bf16.msra.mxu0 0
    %258 = vmatpush.bf16.msra.mxu0 0
    %259 = vmatpush.bf16.msra.mxu0 %v246
    %260 = vmatpush.bf16.msra.mxu0 %v245
    %261 = vmatmul.bf16.gmra.mxu0 %v251
    %v262 = vpop.f32.mrf.mxu0
    %v263 = vadd.f32 %v235, %v262
    %v264 = vpop.f32.mrf.mxu0
    %v265 = vadd.f32 %v235, %v264
    %266 = vdwg.mxu0
    %v267 = vld [vmem:[%s6] sm:$0x1]
    %v268 = vld [vmem:[#allocation10] sm:$0xf]
    %v269 = vld [vmem:[#allocation10 + $0x4] sm:$0xf]
    %v270 = vld [vmem:[#allocation10 + $0x8] sm:$0xf]
    %v271 = vld [vmem:[#allocation10 + $0xc] sm:$0xf]
    %v272 = vld [vmem:[%s8] sm:$0x1]
    %v274 = vperm.slane %v272, 0
    %v280 = vunpack.c.l.b16 %v268
    %v281 = vunpack.c.l.b16 %v269
    %v282 = vunpack.c.l.b16 %v270
    %v283 = vunpack.c.l.b16 %v271
    %v284 = vpack.c.b16 %v281, %v280
    %v285 = vpack.c.b16 %v283, %v282
    %v289 = vsel %vm249, %v267, 0
    %291 = vmatpush.bf16.msra.mxu0 0
    %292 = vmatpush.bf16.msra.mxu0 0
    %293 = vmatpush.bf16.msra.mxu0 0
    %294 = vmatpush.bf16.msra.mxu0 0
    %295 = vmatpush.bf16.msra.mxu0 0
    %296 = vmatpush.bf16.msra.mxu0 0
    %297 = vmatpush.bf16.msra.mxu0 %v285
    %298 = vmatpush.bf16.msra.mxu0 %v284
    %299 = vmatmul.bf16.gmra.mxu0 %v289
    %v300 = vpop.f32.mrf.mxu0
    %v301 = vadd.f32 %v274, %v300
    %v302 = vpop.f32.mrf.mxu0
    %303 = vdwg.mxu0
    %v304 = vmul.f32 %v301, 0.01
    %v305 = vmax.f32 %v301, %v304
    %v306 = vpack.c.bf16 %v305, %v305
    %v307 = vld [vmem:[#allocation11] sm:$0xf]
    %v308 = vld [vmem:[#allocation11 + $0x4] sm:$0xf]
    %v309 = vld [vmem:[#allocation11 + $0x8] sm:$0xf]
    %v310 = vld [vmem:[#allocation11 + $0xc] sm:$0xf]
    %v311 = vld [vmem:[%s10] sm:$0x1]
    %v313 = vperm.slane %v311, 0
    %v319 = vunpack.c.l.b16 %v307
    %v320 = vunpack.c.l.b16 %v308
    %v321 = vunpack.c.l.b16 %v309
    %v322 = vunpack.c.l.b16 %v310
    %v323 = vpack.c.b16 %v320, %v319
    %v324 = vpack.c.b16 %v322, %v321
    %v328 = vsel %vm249, %v306, 0
    %330 = vmatpush.bf16.msra.mxu0 0
    %331 = vmatpush.bf16.msra.mxu0 0
    %332 = vmatpush.bf16.msra.mxu0 0
    %333 = vmatpush.bf16.msra.mxu0 0
    %334 = vmatpush.bf16.msra.mxu0 0
    %335 = vmatpush.bf16.msra.mxu0 0
    %336 = vmatpush.bf16.msra.mxu0 %v324
    %337 = vmatpush.bf16.msra.mxu0 %v323
    %338 = vmatmul.bf16.gmra.mxu0 %v328
    %v339 = vpop.f32.mrf.mxu0
    %v340 = vadd.f32 %v313, %v339
    %v341 = vpop.f32.mrf.mxu0
    %342 = vdwg.mxu0
    %v343 = vmul.f32 %v340, 0.01
    %v344 = vmax.f32 %v340, %v343
    %v345 = vld [vmem:[#allocation5] sm:$0x1]
    %v346 = vpack.c.bf16 %v344, %v344
    %vm347 = vcmask 15360
    %v349 = vsel %vm347, %v345, 0
    %vm351 = vcmask 1040384
    %v353 = vsel %vm351, %v346, 0
    %355 = vmatpush.bf16.msra.mxu0 0
    %356 = vmatpush.bf16.msra.mxu0 0
    %357 = vmatpush.bf16.msra.mxu0 0
    %358 = vmatpush.bf16.msra.mxu0 0
    %359 = vmatpush.bf16.msra.mxu0 0
    %360 = vmatpush.bf16.msra.mxu0 0
    %361 = vmatpush.bf16.msra.mxu0 0
    %362 = vmatpush.bf16.msra.mxu0 %v353
    %363 = vmatmul.bf16.gmra.mxu0 %v349
    %v364 = vpop.f32.mrf.mxu0
    %v365 = vadd.f32 0.0, %v364
    %v366 = vpop.f32.mrf.mxu0
    %367 = vdwg.mxu0
    %v369 = vrot.slane %v365, 1
    %v370 = vperm.slane %v365, 0
    %v371 = vperm.slane %v369, 0
    %v374 = vmul.f32 %v263, %v370
    %v375 = vmul.f32 %v265, %v371
    %v376 = vsel %vm249, %v374, 0.0
    %377 = vadd.xlane.f32.xlu0 %v376
    %v378 = vpop.xlane.xlu0 %377
    %v379 = vsel %vm249, %v375, 0.0
    %380 = vadd.xlane.f32.xlu0 %v379
    %v381 = vpop.xlane.xlu0 %380
    %v382 = vsel %vm194, %v378, -1000.0
    %v383 = vsel %vm195, %v381, -1000.0
    %v386 = vlaneseq
    %v387 = vand.u32 %v386, 127
    %v388 = vperm.slane %v382, %v387
    %v389 = vperm.slane %v383, %v387
    %vm390 = vcmask 1041409
    %v391 = vsel %vm390, %v389, %v388
    %vm393 = vcmask 58368
    %v394 = vsel %vm393, %v391, -inf
    %395 = vmax.xlane.f32.xlu0 %v394
    %v396 = vpop.xlane.xlu0 %395
    %v398 = vperm.slane %v396, 0
    %v399 = vperm.slane %v396, 1
    %v402 = vsub.f32 %v382, %v398
    %v403 = vsub.f32 %v383, %v399
    %v404 = vmul.f32 %v402, 1.442695
    %v405 = vpow.pop %v404
    %v406 = vmul.f32 %v403, 1.442695
    %v407 = vpow.pop %v406
    %410 = vset.pattern.permute.xlu0 0
    %411 = vperm.xlu0 %410, %v405
    %v412 = vpop.permute.xlu0 %411
    %413 = vset.pattern.permute.xlu0 0
    %414 = vperm.xlu0 %413, %v407
    %v415 = vpop.permute.xlu0 %414
    %v416 = vperm.slane %v412, %v387
    %v417 = vperm.slane %v415, %v387
    %v418 = vsel %vm390, %v417, %v416
    %v420 = vsel %vm393, %v418, 0.0
    %421 = vadd.xlane.f32.xlu0 %v420
    %v422 = vpop.xlane.xlu0 %421
    %v423 = vrcp.pop %v422
    %v425 = vperm.slane %v423, 0
    %v426 = vperm.slane %v423, 1
    %v429 = vmul.f32 %v405, %v425
    %v430 = vmul.f32 %v407, %v426
    %v431 = vpack.c.bf16 %v429, %v429
    %v432 = vpack.c.bf16 %v430, %v430
    %v433 = vpack.c.bf16 %v263, %v263
    %v434 = vpack.c.bf16 %v265, %v265
    %v436 = vunpack.c.l.b16 %v431
    %v437 = vpack.c.b16 %v436, %v436
    %v438 = vunpack.c.l.b16 %v437
    %439 = vset.pattern.permute.xlu0 0
    %440 = vperm.xlu0 %439, %v438
    %v441 = vpop.permute.xlu0 %440
    %v442 = vperm.slane %v441, %v387
    %v443 = vpack.c.b16 %v442, %v442
    %vm444 = vcmask 64512
    %v446 = vsel %vm444, %v443, 0
    %vm448 = vcmask 1043456
    %v450 = vsel %vm448, %v433, 0
    %452 = vmatpush.bf16.msra.mxu0 0
    %453 = vmatpush.bf16.msra.mxu0 0
    %454 = vmatpush.bf16.msra.mxu0 0
    %455 = vmatpush.bf16.msra.mxu0 0
    %456 = vmatpush.bf16.msra.mxu0 0
    %457 = vmatpush.bf16.msra.mxu0 0
    %458 = vmatpush.bf16.msra.mxu0 0
    %459 = vmatpush.bf16.msra.mxu0 %v450
    %460 = vmatmul.bf16.gmra.mxu0 %v446
    %v461 = vpop.f32.mrf.mxu0
    %v462 = vadd.f32 0.0, %v461
    %v463 = vpop.f32.mrf.mxu0
    %464 = vdwg.mxu0
    %v466 = vunpack.c.l.b16 %v432
    %v467 = vpack.c.b16 %v466, %v466
    %v468 = vunpack.c.l.b16 %v467
    %469 = vset.pattern.permute.xlu0 0
    %470 = vperm.xlu0 %469, %v468
    %v471 = vpop.permute.xlu0 %470
    %v472 = vperm.slane %v471, %v387
    %v473 = vpack.c.b16 %v472, %v472
    %v475 = vsel %vm444, %v473, 0
    %v478 = vsel %vm448, %v434, 0
    %480 = vmatpush.bf16.msra.mxu0 0
    %481 = vmatpush.bf16.msra.mxu0 0
    %482 = vmatpush.bf16.msra.mxu0 0
    %483 = vmatpush.bf16.msra.mxu0 0
    %484 = vmatpush.bf16.msra.mxu0 0
    %485 = vmatpush.bf16.msra.mxu0 0
    %486 = vmatpush.bf16.msra.mxu0 0
    %487 = vmatpush.bf16.msra.mxu0 %v478
    %488 = vmatmul.bf16.gmra.mxu0 %v475
    %v489 = vpop.f32.mrf.mxu0
    %v490 = vadd.f32 0.0, %v489
    %v491 = vpop.f32.mrf.mxu0
    %492 = vdwg.mxu0
    %v493 = vpack.c.bf16 %v462, %v462
    %v494 = vpack.c.bf16 %v490, %v490
    %v495 = vld [vmem:[#allocation13] sm:$0xf]
    %v496 = vld [vmem:[#allocation13 + $0x4] sm:$0xf]
    %v497 = vld [vmem:[#allocation13 + $0x8] sm:$0xf]
    %v498 = vld [vmem:[#allocation13 + $0xc] sm:$0xf]
    %v499 = vld [vmem:[%s12] sm:$0x1]
    %v501 = vperm.slane %v499, 0
    %v505 = vunpack.c.l.b16 %v493
    %v506 = vunpack.c.l.b16 %v494
    %v507 = vrot.slane %v506, 7
    %v508 = vsel %vm390, %v507, %v505
    %v509 = vpack.c.b16 %v508, %v508
    %v514 = vunpack.c.l.b16 %v495
    %v515 = vunpack.c.l.b16 %v496
    %v516 = vunpack.c.l.b16 %v497
    %v517 = vunpack.c.l.b16 %v498
    %v518 = vpack.c.b16 %v515, %v514
    %v519 = vpack.c.b16 %v517, %v516
    %v523 = vsel %vm249, %v509, 0
    %525 = vmatpush.bf16.msra.mxu0 0
    %526 = vmatpush.bf16.msra.mxu0 0
    %527 = vmatpush.bf16.msra.mxu0 0
    %528 = vmatpush.bf16.msra.mxu0 0
    %529 = vmatpush.bf16.msra.mxu0 0
    %530 = vmatpush.bf16.msra.mxu0 0
    %531 = vmatpush.bf16.msra.mxu0 %v519
    %532 = vmatpush.bf16.msra.mxu0 %v518
    %533 = vmatmul.bf16.gmra.mxu0 %v523
    %v534 = vpop.f32.mrf.mxu0
    %v535 = vadd.f32 %v501, %v534
    %v536 = vpop.f32.mrf.mxu0
    %537 = vdwg.mxu0
    %v538 = vmul.f32 %v535, 0.01
    %v539 = vmax.f32 %v535, %v538
    %vm540 = vcmask 254976
    %v541 = vsel %vm540, %v539, 0.0
    %v542 = vrot.slane %v541, 4
    %v543 = vadd.f32 %v541, %v542
    %v544 = vrot.slane %v543, 2
    %v545 = vadd.f32 %v543, %v544
    %v546 = vrot.slane %v545, 1
    %v547 = vadd.f32 %v545, %v546
    %v548 = vrcp.pop 2.0
    %v549 = vmul.f32 2.0, %v548
    %v550 = vsub.f32 1.0, %v549
    %v551 = vmul.f32 %v548, %v550
    %v552 = vadd.f32 %v548, %v551
    %vm553 = vweird.f32 %v548
    %v554 = vsel %vm553, %v548, %v552
    %v555 = vmul.f32 %v547, %v554
    %v556 = vsub.f32 %v539, %v555
    %v557 = vmul.f32 %v556, %v556
    %v558 = vsel %vm540, %v557, 0.0
    %v559 = vrot.slane %v558, 4
    %v560 = vadd.f32 %v558, %v559
    %v561 = vrot.slane %v560, 2
    %v562 = vadd.f32 %v560, %v561
    %v563 = vrot.slane %v562, 1
    %v564 = vadd.f32 %v562, %v563
    %v565 = vmul.f32 %v564, %v554
    %v566 = vld [vmem:[%s13] sm:$0x1]
    %v568 = vperm.slane %v566, 0
    %v570 = vmul.f32 %v568, %v556
    %v571 = vadd.f32 %v565, 1e-05
    %v572 = vrsqrt.pop %v571
    %v573 = vmul.f32 %v572, %v571
    %v574 = vmul.f32 %v573, %v572
    %v575 = vmul.f32 0.5, %v574
    %v576 = vsub.f32 1.5, %v575
    %v577 = vmul.f32 %v572, %v576
    %vm578 = vweird.f32 %v571
    %vm579 = vweird.f32 %v572
    %vm580 = vmor %vm578, %vm579
    %v581 = vsel %vm580, %v572, %v577
    %v582 = vmul.f32 %v570, %v581
    %v583 = vld [vmem:[%s14] sm:$0x1]
    %v585 = vperm.slane %v583, 0
    %v587 = vadd.f32 %v582, %v585
    %v588 = vpack.c.bf16 %v587, %v587
    %v589 = vld [vmem:[#allocation14] sm:$0xf]
    %v590 = vld [vmem:[#allocation14 + $0x4] sm:$0xf]
    %v591 = vld [vmem:[#allocation14 + $0x8] sm:$0xf]
    %v592 = vld [vmem:[#allocation14 + $0xc] sm:$0xf]
    %v593 = vld [vmem:[%s16] sm:$0x1]
    %v595 = vperm.slane %v593, 0
    %v601 = vunpack.c.l.b16 %v589
    %v602 = vunpack.c.l.b16 %v590
    %v603 = vunpack.c.l.b16 %v591
    %v604 = vunpack.c.l.b16 %v592
    %v605 = vpack.c.b16 %v602, %v601
    %v606 = vpack.c.b16 %v604, %v603
    %v610 = vsel %vm249, %v588, 0
    %612 = vmatpush.bf16.msra.mxu0 0
    %613 = vmatpush.bf16.msra.mxu0 0
    %614 = vmatpush.bf16.msra.mxu0 0
    %615 = vmatpush.bf16.msra.mxu0 0
    %616 = vmatpush.bf16.msra.mxu0 0
    %617 = vmatpush.bf16.msra.mxu0 0
    %618 = vmatpush.bf16.msra.mxu0 %v606
    %619 = vmatpush.bf16.msra.mxu0 %v605
    %620 = vmatmul.bf16.gmra.mxu0 %v610
    %v621 = vpop.f32.mrf.mxu0
    %v622 = vadd.f32 %v595, %v621
    %v623 = vpop.f32.mrf.mxu0
    %624 = vdwg.mxu0
    %625 = vst [vmem:[#allocation16] sm:$0x3] %v622
    // Predicated region
    $region102: #{tpu_custom_call.1} parent=1 // pred_check
      _
    $region103: #{tpu_custom_call.1} parent=1 // pred_check_branch
      %627 = sbr.rel (0) target = $region105
    $region104: #{tpu_custom_call.1} parent=1 // pred_region
      %629 = vsyncadd [#allocation4], 0
      %s631 = sshll.u32 [#allocation16], 4
      %s632 = int_to_ptr.vmem [resolvable:$true] %s631
      %s633 = sshll.u32 %s17, 4
      %s634 = int_to_ptr.hbm [resolvable:$true] %s633
      %636 = dma.vmem_to_hbm [thread:$0]  %s632, 32, %s634, [#allocation4]
    $region105: #{tpu_custom_call.1} parent=1 // pred_fallthru
      _
    // Predicated region
    $region106: #{tpu_custom_call.1} parent=1 // pred_check
      _
    $region107: #{tpu_custom_call.1} parent=1 // pred_check_branch
      %638 = sbr.rel (0) target = $region109
    $region108: #{tpu_custom_call.1} parent=1 // pred_region
      %640 = dma.done [#allocation4], 32
    $region109: #{tpu_custom_call.1} parent=1 // pred_fallthru
      _
    %641 = vsyncpa [#allocation3], 1
    %642 = vsyncpa [#allocation6], 1
    %643 = vsyncpa [#allocation9], 1
    %644 = vsyncpa [#allocation12], 1
    %645 = vsyncpa [#allocation15], 1
    %646 = vsyncpa [#allocation4], 1

</llo_original>
